<compile_context>
chip_gen: v5e
topology: v5e:2x2
jax: 0.10.0
libtpu: 0.0.40
codegen_flags: <defaults>
</compile_context>

<pallas_src>
import functools

import jax
import jax.numpy as jnp
from jax.experimental import pallas as pl
from jax.experimental.pallas import tpu as pltpu


def inter_attention_kernel(x_ref, w_ref, b_ref, vrow_ref, out_ref, *, query_dim):
    TB, S, D = x_ref.shape
    units = w_ref.shape[-1]

    x = x_ref[...]                                              # (TB, S, D)

    # Single fused projection on the MXU: M = TB*S rows, K = qd+kd.
    h = jnp.tanh(
        jnp.dot(x.reshape(TB * S, D), w_ref[...],
                preferred_element_type=jnp.float32)
        + b_ref[...]
    ).reshape(TB, S, units)

    # Attention score: VPU multiply + lane reduction (no N=1 MXU pass).
    score = jnp.sum(h * vrow_ref[...], axis=-1, keepdims=True)  # (TB, S, 1)

    # Softmax over the sequence axis (dim 0 of each instance).
    m = jnp.max(score, axis=1, keepdims=True)
    e = jnp.exp(score - m)
    attn = e * pl.reciprocal(jnp.sum(e, axis=1, keepdims=True), approx=False)

    # Weighted sum of values over the sequence axis.
    kv = x[..., query_dim:]                                     # (TB, S, kd)
    out_ref[...] = jnp.sum(kv * attn, axis=1)                   # (TB, kd)


def inter_attention_batched(query, key_or_value, w1, b1, w2, b2, v, bv,
                            *, block_b=None):
    """query: (B, S, query_dim), key_or_value: (B, S, kv_dim) -> (B, kv_dim)."""
    del bv  # constant shift before the axis-0 softmax: mathematically a no-op
    B, S, qd = query.shape
    kd = key_or_value.shape[-1]
    units = w1.shape[-1]
    D = qd + kd

    # Host-side fusions: one input operand, one weight, one bias, one V row.
    x = jnp.concatenate([query, key_or_value], axis=-1).astype(jnp.float32)
    w = jnp.concatenate([w1, w2], axis=0).astype(jnp.float32)        # (D, units)
    b = (b1 + b2).reshape(1, units).astype(jnp.float32)
    vrow = v.reshape(1, units).astype(jnp.float32)

    if block_b is None:
        block_b = B if B <= 8 else 8
    assert B % block_b == 0, (B, block_b)
    grid = (B // block_b,)

    kernel = functools.partial(inter_attention_kernel, query_dim=qd)

    return pl.pallas_call(
        kernel,
        out_shape=jax.ShapeDtypeStruct((B, kd), jnp.float32),
        grid=grid,
        in_specs=[
            pl.BlockSpec((block_b, S, D), lambda i: (i, 0, 0)),
            pl.BlockSpec((D, units), lambda i: (0, 0)),
            pl.BlockSpec((1, units), lambda i: (0, 0)),
            pl.BlockSpec((1, units), lambda i: (0, 0)),
        ],
        out_specs=pl.BlockSpec((block_b, kd), lambda i: (i, 0)),
        compiler_params=pltpu.CompilerParams(
            # Batch axis is independent -> shard across the 2 TCs on v7x;
            # harmless on v5e/v6e (1 TC).
            dimension_semantics=("parallel",)),
    )(x, w, b, vrow)


def inter_attention(query, key_or_value, w1, b1, w2, b2, v, bv):
    """Single-instance forward matching the PyTorch module exactly."""
    out = inter_attention_batched(query[None], key_or_value[None],
                                  w1, b1, w2, b2, v, bv)
    return out[0]  # (key_or_value_dim,)


def reference_single(query, key_or_value, w1, b1, w2, b2, v, bv):
    h = jnp.tanh(query @ w1 + b1 + key_or_value @ w2 + b2)
    score = h @ v + bv
    attn = jax.nn.softmax(score, axis=0)
    return jnp.sum(key_or_value * attn, axis=0)


if __name__ == "__main__":
    # Small shapes consistent with the module's forward; batched to amortize
    # launch/DMA overhead.
    B = 16           # number of independent attention instances
    S = 8            # sequence length (softmax / reduction axis = dim 0)
    query_dim = 32
    kv_dim = 16
    units = 32

    key = jax.random.PRNGKey(0)
    k_q, k_kv, k_w1, k_b1, k_w2, k_b2, k_v, k_bv = jax.random.split(key, 8)

    query = jax.random.normal(k_q, (B, S, query_dim), dtype=jnp.float32)
    key_or_value = jax.random.normal(k_kv, (B, S, kv_dim), dtype=jnp.float32)

    # Deterministic parameter init (nn.Linear-style uniform), stored pre-transposed.
    def lin_init(kw, kb, fan_in, fan_out):
        bound = 1.0 / jnp.sqrt(fan_in)
        w = jax.random.uniform(kw, (fan_in, fan_out), jnp.float32, -bound, bound)
        b = jax.random.uniform(kb, (1, fan_out), jnp.float32, -bound, bound)
        return w, b

    w1, b1 = lin_init(k_w1, k_b1, query_dim, units)
    w2, b2 = lin_init(k_w2, k_b2, kv_dim, units)
    v, bv = lin_init(k_v, k_bv, units, 1)

    # Batched kernel: one pallas_call, grid over the batch axis.
    out_b = inter_attention_batched(query, key_or_value, w1, b1, w2, b2, v, bv)
    jax.block_until_ready(out_b)

    ref_b = jax.vmap(
        lambda q, kv: reference_single(q, kv, w1, b1, w2, b2, v, bv)
    )(query, key_or_value)
    assert out_b.shape == (B, kv_dim)
    assert jnp.allclose(out_b, ref_b, atol=1e-5, rtol=1e-5), (out_b, ref_b)

    # Single-instance path (exact forward of the original module).
    out_1 = inter_attention(query[0], key_or_value[0], w1, b1, w2, b2, v, bv)
    jax.block_until_ready(out_1)
    ref_1 = reference_single(query[0], key_or_value[0], w1, b1, w2, b2, v, bv)
    assert out_1.shape == (kv_dim,)
    assert jnp.allclose(out_1, ref_1, atol=1e-5, rtol=1e-5), (out_1, ref_1)

    print("KERNEL_OK")
</pallas_src>

<mosaic_0001>
module attributes {stable_mosaic.version = 11 : i64} {
  func.func @inter_attention_kernel(%arg0: i32, %arg1: memref<8x8x48xf32, #tpu.memory_space<vmem>>, %arg2: memref<48x32xf32, #tpu.memory_space<vmem>>, %arg3: memref<1x32xf32, #tpu.memory_space<vmem>>, %arg4: memref<1x32xf32, #tpu.memory_space<vmem>>, %arg5: memref<8x16xf32, #tpu.memory_space<vmem>>) attributes {dimension_semantics = [#tpu.dimension_semantics<parallel>], iteration_bounds = array<i64: 2>, scalar_prefetch = 0 : i64, scratch_operands = 0 : i64, tpu.core_type = #tpu.core_type<tc>, window_params = [{transform_indices = @transform_0, window_bounds = array<i64: 8, 8, 48>}, {pipeline_mode = #tpu.pipeline_mode<synchronous>, transform_indices = @transform_1, window_bounds = array<i64: 48, 32>}, {pipeline_mode = #tpu.pipeline_mode<synchronous>, transform_indices = @transform_2, window_bounds = array<i64: 1, 32>}, {pipeline_mode = #tpu.pipeline_mode<synchronous>, transform_indices = @transform_3, window_bounds = array<i64: 1, 32>}, {transform_indices = @transform_4, window_bounds = array<i64: 8, 16>}]} {
    %c0 = arith.constant 0 : index
    %c0_0 = arith.constant 0 : index
    %c0_1 = arith.constant 0 : index
    %0 = vector.load %arg1[%c0, %c0_0, %c0_1] : memref<8x8x48xf32, #tpu.memory_space<vmem>>, vector<8x8x48xf32>
    %1 = vector.shape_cast %0 : vector<8x8x48xf32> to vector<64x48xf32>
    %c0_2 = arith.constant 0 : index
    %c0_3 = arith.constant 0 : index
    %2 = vector.load %arg2[%c0_2, %c0_3] : memref<48x32xf32, #tpu.memory_space<vmem>>, vector<48x32xf32>
    %cst = arith.constant dense<0.000000e+00> : vector<64x32xf32>
    %3 = tpu.matmul %1, %2, %cst {dimension_numbers = #tpu.dot_dimension_numbers<[1], [0], [0], [1], [0, 0, 1, 1], [], []>} : vector<64x48xf32>, vector<48x32xf32>, vector<64x32xf32> -> vector<64x32xf32>
    %c0_4 = arith.constant 0 : index
    %c0_5 = arith.constant 0 : index
    %4 = vector.load %arg3[%c0_4, %c0_5] : memref<1x32xf32, #tpu.memory_space<vmem>>, vector<1x32xf32>
    %5 = vector.broadcast %4 : vector<1x32xf32> to vector<64x32xf32>
    %6 = arith.addf %3, %5 : vector<64x32xf32>
    %7 = math.tanh %6 : vector<64x32xf32>
    %8 = vector.shape_cast %7 : vector<64x32xf32> to vector<8x8x32xf32>
    %c0_6 = arith.constant 0 : index
    %c0_7 = arith.constant 0 : index
    %9 = vector.load %arg4[%c0_6, %c0_7] : memref<1x32xf32, #tpu.memory_space<vmem>>, vector<1x32xf32>
    %10 = vector.shape_cast %9 : vector<1x32xf32> to vector<1x1x32xf32>
    %11 = vector.broadcast %10 : vector<1x1x32xf32> to vector<8x8x32xf32>
    %12 = arith.mulf %8, %11 : vector<8x8x32xf32>
    %cst_8 = arith.constant dense<0.000000e+00> : vector<8x8xf32>
    %13 = vector.multi_reduction <add>, %12, %cst_8 [2] : vector<8x8x32xf32> to vector<8x8xf32>
    %14 = vector.shape_cast %13 : vector<8x8xf32> to vector<8x8x1xf32>
    %cst_9 = arith.constant dense<0xFF800000> : vector<8x1xf32>
    %15 = vector.multi_reduction <maximumf>, %14, %cst_9 [1] : vector<8x8x1xf32> to vector<8x1xf32>
    %16 = vector.shape_cast %15 : vector<8x1xf32> to vector<8x1x1xf32>
    %17 = vector.broadcast %16 : vector<8x1x1xf32> to vector<8x8x1xf32>
    %18 = arith.subf %14, %17 : vector<8x8x1xf32>
    %19 = math.exp %18 : vector<8x8x1xf32>
    %cst_10 = arith.constant dense<0.000000e+00> : vector<8x1xf32>
    %20 = vector.multi_reduction <add>, %19, %cst_10 [1] : vector<8x8x1xf32> to vector<8x1xf32>
    %21 = vector.shape_cast %20 : vector<8x1xf32> to vector<8x1x1xf32>
    %22 = tpu.reciprocal %21 : vector<8x1x1xf32> -> vector<8x1x1xf32>
    %23 = vector.broadcast %22 : vector<8x1x1xf32> to vector<8x8x1xf32>
    %24 = arith.mulf %19, %23 : vector<8x8x1xf32>
    %25 = vector.extract_strided_slice %0 {offsets = [0, 0, 32], sizes = [8, 8, 16], strides = [1, 1, 1]} : vector<8x8x48xf32> to vector<8x8x16xf32>
    %26 = vector.broadcast %24 : vector<8x8x1xf32> to vector<8x8x16xf32>
    %27 = arith.mulf %25, %26 : vector<8x8x16xf32>
    %cst_11 = arith.constant dense<0.000000e+00> : vector<8x16xf32>
    %28 = vector.multi_reduction <add>, %27, %cst_11 [1] : vector<8x8x16xf32> to vector<8x16xf32>
    %c0_12 = arith.constant 0 : index
    %c0_13 = arith.constant 0 : index
    %29 = vector.load %arg5[%c0_12, %c0_13] : memref<8x16xf32, #tpu.memory_space<vmem>>, vector<8x16xf32>
    tpu.vector_store %arg5[%c0_12, %c0_13], %28 {strides = array<i32>} : memref<8x16xf32, #tpu.memory_space<vmem>>, vector<8x16xf32>,
    return
  }
  func.func @transform_0(%arg0: i32) -> (i32, i32, i32) {
    %c0_i32 = arith.constant 0 : i32
    %c0_i32_0 = arith.constant 0 : i32
    %c0_i32_1 = arith.constant 0 : i32
    return %arg0, %c0_i32, %c0_i32_0 : i32, i32, i32
  }
  func.func @transform_1(%arg0: i32) -> (i32, i32) {
    %c0_i32 = arith.constant 0 : i32
    %c0_i32_0 = arith.constant 0 : i32
    %c0_i32_1 = arith.constant 0 : i32
    return %c0_i32, %c0_i32_0 : i32, i32
  }
  func.func @transform_2(%arg0: i32) -> (i32, i32) {
    %c0_i32 = arith.constant 0 : i32
    %c0_i32_0 = arith.constant 0 : i32
    %c0_i32_1 = arith.constant 0 : i32
    return %c0_i32, %c0_i32_0 : i32, i32
  }
  func.func @transform_3(%arg0: i32) -> (i32, i32) {
    %c0_i32 = arith.constant 0 : i32
    %c0_i32_0 = arith.constant 0 : i32
    %c0_i32_1 = arith.constant 0 : i32
    return %c0_i32, %c0_i32_0 : i32, i32
  }
  func.func @transform_4(%arg0: i32) -> (i32, i32) {
    %c0_i32 = arith.constant 0 : i32
    %c0_i32_0 = arith.constant 0 : i32
    return %arg0, %c0_i32 : i32, i32
  }
}

</mosaic_0001>

<llo_original>
// kernel: tpu_custom_call.1
$region0: #{tpu_custom_call.1}
  #allocation0 [shape = 'u32[]', space=smem, size = 0x4, offset = 0x4, fixed_abs, tag = 'smem constant byte address 0x4 - core index']
  #allocation1 [shape = 'u32[72,128]{1,0:T(1,128)}', space=vmem, size = 0x9000, scoped, tag = 'internal scratch']
  %s0 = inlined_call_operand.hbm [shape: f32[16,8,48], index: 0, kind: input, shape index: {}]
  %s1 = inlined_call_operand.vmem [shape: f32[48,32], index: 1, kind: input, shape index: {}]
  %s2 = inlined_call_operand.vmem [shape: f32[1,32], index: 2, kind: input, shape index: {}]
  %s3 = inlined_call_operand.vmem [shape: f32[1,32], index: 3, kind: input, shape index: {}]
  %s4 = inlined_call_operand.hbm [shape: f32[16,16], index: 4, kind: output, shape index: {}]
  %s5 = sld [smem:[#allocation0]]
  $region53: #{tpu_custom_call.1} parent=0
    _
  %s7 = ssub.s32 1, %s5
  %s8 = scalar_select 0, %s7, %s5
  $region1: #{tpu_custom_call.1} parent=0
    #allocation2 [shape = 'u8[65536]{0}', space=vmem, size = 0x10000, scoped, tag = 'input window, operand 0']
    #allocation3 [shape = 's32[2]{0}', space=sflag, size = 0x8, scoped, tag = 'scoped memory for tpu_custom_call.1']
    #allocation4 [shape = 's32[2]{0}', space=sflag, size = 0x8, scoped, tag = 'scoped memory for tpu_custom_call.1']
    #allocation5 [shape = 'u8[8192]{0}', space=vmem, size = 0x2000, scoped, tag = 'output window, operand 0']
    %9 = vsyncpa [#allocation3], 0
    %s10 = scalar_lea.sflag [#allocation3], 1
    %11 = vsyncpa %s10, 0
    %12 = vsyncpa [#allocation4], 0
    %s13 = scalar_lea.sflag [#allocation4], 1
    %14 = vsyncpa %s13, 0
    loop: start=0, step=1, limit=4
    $region2: #{tpu_custom_call.1} parent=1 // loop_pre_header
      _
    $region3: #{tpu_custom_call.1} parent=1 // loop_header
      %s16 = sphi 0, %s20
      %p17 = scmp.ge.s32.totalorder %s16, 4
      %s26 = sphi 0, %s28
      %s29 = sphi 0, %s26
      %s30 = sphi 0, %s29
      %s46 = sphi 0, %s30
      %s50 = sphi 0, %s50
      %s52 = sphi 0, %s50
      %s53 = sphi 0, %s52
      %s67 = sphi 0, %s53
      %s71 = sphi 0, %s71
      %s73 = sphi 0, %s71
      %s74 = sphi 0, %s73
      %s88 = sphi 0, %s74
      %s92 = sphi 0, %s92
      %s94 = sphi 0, %s92
      %s95 = sphi 0, %s94
      %s109 = sphi 0, %s95
      %s115 = sphi 0, %s117
      %s118 = sphi 0, %s115
      %s119 = sphi 0, %s118
      %s135 = sphi 0, %s119
    $region4: #{tpu_custom_call.1} parent=1 // loop_header_branch
      %19 = sbr.rel (%p17) target = $region8
    $region5: #{tpu_custom_call.1} parent=1 // loop_body
      %s21 = ssub.s32 %s16, 1
      %s22 = ssub.s32 %s16, 2
      %s23 = sadd.s32 %s16, 1
      %s24 = ssub.s32 %s16, %s23
      %p25 = scmp.eq.s32.totalorder %s24, 0
      %s27 = sadd.s32 %s26, 1
      %s28 = scalar_select %p25, %s26, %s27
      %p31 = pneg %p25
      %p32 = scmp.eq.s32.totalorder %s16, 1
      %p33 = por %p31, %p32
      %p34 = scmp.ne.s32.totalorder %s26, %s29
      %p35 = scmp.eq.s32.totalorder %s16, 0
      %p36 = por %p34, %p35
      %p37 = scmp.ne.s32.totalorder %s26, %s29
      %p38 = scmp.eq.s32.totalorder %s21, 1
      %p39 = por %p37, %p38
      %p40 = scmp.ne.s32.totalorder %s29, %s30
      %p41 = scmp.eq.s32.totalorder %s21, 0
      %p42 = por %p40, %p41
      %p43 = scmp.ne.s32.totalorder %s29, %s30
      %p44 = scmp.eq.s32.totalorder %s22, 1
      %p45 = por %p43, %p44
      %p47 = scmp.ne.s32.totalorder %s30, %s46
      %p48 = scmp.eq.s32.totalorder %s22, 0
      %p49 = por %p47, %p48
      %s51 = sadd.s32 %s50, 1
      %p54 = scmp.eq.s32.totalorder %s16, 1
      %p55 = scmp.ne.s32.totalorder %s50, %s52
      %p56 = scmp.eq.s32.totalorder %s16, 0
      %p57 = por %p55, %p56
      %p58 = scmp.ne.s32.totalorder %s50, %s52
      %p59 = scmp.eq.s32.totalorder %s21, 1
      %p60 = por %p58, %p59
      %p61 = scmp.ne.s32.totalorder %s52, %s53
      %p62 = scmp.eq.s32.totalorder %s21, 0
      %p63 = por %p61, %p62
      %p64 = scmp.ne.s32.totalorder %s52, %s53
      %p65 = scmp.eq.s32.totalorder %s22, 1
      %p66 = por %p64, %p65
      %p68 = scmp.ne.s32.totalorder %s53, %s67
      %p69 = scmp.eq.s32.totalorder %s22, 0
      %p70 = por %p68, %p69
      %s72 = sadd.s32 %s71, 1
      %p75 = scmp.eq.s32.totalorder %s16, 1
      %p76 = scmp.ne.s32.totalorder %s71, %s73
      %p77 = scmp.eq.s32.totalorder %s16, 0
      %p78 = por %p76, %p77
      %p79 = scmp.ne.s32.totalorder %s71, %s73
      %p80 = scmp.eq.s32.totalorder %s21, 1
      %p81 = por %p79, %p80
      %p82 = scmp.ne.s32.totalorder %s73, %s74
      %p83 = scmp.eq.s32.totalorder %s21, 0
      %p84 = por %p82, %p83
      %p85 = scmp.ne.s32.totalorder %s73, %s74
      %p86 = scmp.eq.s32.totalorder %s22, 1
      %p87 = por %p85, %p86
      %p89 = scmp.ne.s32.totalorder %s74, %s88
      %p90 = scmp.eq.s32.totalorder %s22, 0
      %p91 = por %p89, %p90
      %s93 = sadd.s32 %s92, 1
      %p96 = scmp.eq.s32.totalorder %s16, 1
      %p97 = scmp.ne.s32.totalorder %s92, %s94
      %p98 = scmp.eq.s32.totalorder %s16, 0
      %p99 = por %p97, %p98
      %p100 = scmp.ne.s32.totalorder %s92, %s94
      %p101 = scmp.eq.s32.totalorder %s21, 1
      %p102 = por %p100, %p101
      %p103 = scmp.ne.s32.totalorder %s94, %s95
      %p104 = scmp.eq.s32.totalorder %s21, 0
      %p105 = por %p103, %p104
      %p106 = scmp.ne.s32.totalorder %s94, %s95
      %p107 = scmp.eq.s32.totalorder %s22, 1
      %p108 = por %p106, %p107
      %p110 = scmp.ne.s32.totalorder %s95, %s109
      %p111 = scmp.eq.s32.totalorder %s22, 0
      %p112 = por %p110, %p111
      %s113 = ssub.s32 %s16, %s23
      %p114 = scmp.eq.s32.totalorder %s113, 0
      %s116 = sadd.s32 %s115, 1
      %s117 = scalar_select %p114, %s115, %s116
      %p120 = pneg %p114
      %p121 = scmp.eq.s32.totalorder %s16, 1
      %p122 = por %p120, %p121
      %p123 = scmp.ne.s32.totalorder %s115, %s118
      %p124 = scmp.eq.s32.totalorder %s16, 0
      %p125 = por %p123, %p124
      %p126 = scmp.ne.s32.totalorder %s115, %s118
      %p127 = scmp.eq.s32.totalorder %s21, 1
      %p128 = por %p126, %p127
      %p129 = scmp.ne.s32.totalorder %s118, %s119
      %p130 = scmp.eq.s32.totalorder %s21, 0
      %p131 = por %p129, %p130
      %p132 = scmp.ne.s32.totalorder %s118, %s119
      %p133 = scmp.eq.s32.totalorder %s22, 1
      %p134 = por %p132, %p133
      %p136 = scmp.ne.s32.totalorder %s119, %s135
      %p137 = scmp.eq.s32.totalorder %s22, 0
      %p138 = por %p136, %p137
      %p139 = scmp.le.s32.totalorder 1, %s16
      %p140 = scmp.lt.s32.totalorder %s16, 3
      %p141 = pnand %p139, %p140
      %p142 = pneg %p141
      // Predicated region
      $region9: #{tpu_custom_call.1} parent=5 // pred_check
        _
      $region10: #{tpu_custom_call.1} parent=5 // pred_check_branch
        %144 = sbr.rel (%p141) target = $region12
      $region11: #{tpu_custom_call.1} parent=5 // pred_region
        %s145 = ssub.s32 %s16, 1
        // Predicated region
        $region13: #{tpu_custom_call.1} parent=11 // pred_check
          %p146 = pneg %p63
        $region14: #{tpu_custom_call.1} parent=11 // pred_check_branch
          %148 = sbr.rel (%p146) target = $region16
        $region15: #{tpu_custom_call.1} parent=11 // pred_region
          _
        $region16: #{tpu_custom_call.1} parent=11 // pred_fallthru
          _
        // Predicated region
        $region17: #{tpu_custom_call.1} parent=11 // pred_check
          %p149 = pneg %p84
        $region18: #{tpu_custom_call.1} parent=11 // pred_check_branch
          %151 = sbr.rel (%p149) target = $region20
        $region19: #{tpu_custom_call.1} parent=11 // pred_region
          _
        $region20: #{tpu_custom_call.1} parent=11 // pred_fallthru
          _
        // Predicated region
        $region21: #{tpu_custom_call.1} parent=11 // pred_check
          %p152 = pneg %p105
        $region22: #{tpu_custom_call.1} parent=11 // pred_check_branch
          %154 = sbr.rel (%p152) target = $region24
        $region23: #{tpu_custom_call.1} parent=11 // pred_region
          _
        $region24: #{tpu_custom_call.1} parent=11 // pred_fallthru
          _
      $region12: #{tpu_custom_call.1} parent=5 // pred_fallthru
        _
      %p155 = scmp.lt.s32.totalorder %s16, 2
      // Predicated region
      $region25: #{tpu_custom_call.1} parent=5 // pred_check
        %p156 = pneg %p155
      $region26: #{tpu_custom_call.1} parent=5 // pred_check_branch
        %158 = sbr.rel (%p156) target = $region28
      $region27: #{tpu_custom_call.1} parent=5 // pred_region
        // Predicated region
        $region29: #{tpu_custom_call.1} parent=27 // pred_check
          %p159 = pneg %p36
        $region30: #{tpu_custom_call.1} parent=27 // pred_check_branch
          %161 = sbr.rel (%p159) target = $region32
        $region31: #{tpu_custom_call.1} parent=27 // pred_region
          %s162 = sand.u32 %s26, 1
          %s163 = scalar_lea.sflag [#allocation3], %s162
          %s164 = sand.u32 %s26, 1
          %s165 = smul.addr %s164, 64
          %s166 = scalar_lea.vmem [#allocation2], %s165
          %s167 = smul.u32 8, %s16
          %169 = vsyncadd %s163, 0
          %s170 = smul.addr %s167, 8
          %s171 = scalar_lea.hbm %s0, %s170
          %s172 = sshll.u32 %s171, 4
          %s173 = int_to_ptr.hbm [resolvable:$true] %s172
          %s174 = sshll.u32 %s166, 4
          %s175 = int_to_ptr.vmem [resolvable:$true] %s174
          %180 = dma.hbm_to_vmem [thread:$0]  %s173, 1024, %s175, %s163, 128, 128, 8
        $region32: #{tpu_custom_call.1} parent=27 // pred_fallthru
          _
      $region28: #{tpu_custom_call.1} parent=5 // pred_fallthru
        _
      %p181 = scmp.le.s32.totalorder 1, %s16
      %p182 = scmp.lt.s32.totalorder %s16, 3
      %p183 = pnand %p181, %p182
      %p184 = pneg %p183
      // Predicated region
      $region33: #{tpu_custom_call.1} parent=5 // pred_check
        _
      $region34: #{tpu_custom_call.1} parent=5 // pred_check_branch
        %186 = sbr.rel (%p183) target = $region36
      $region35: #{tpu_custom_call.1} parent=5 // pred_region
        %s187 = ssub.s32 %s16, 1
        %s188 = sand.u32 %s29, 1
        %s189 = scalar_lea.sflag [#allocation3], %s188
        %s190 = sand.u32 %s29, 1
        %s191 = smul.addr %s190, 64
        %s192 = scalar_lea.vmem [#allocation2], %s191
        // Predicated region
        $region37: #{tpu_custom_call.1} parent=35 // pred_check
          %p193 = pneg %p42
        $region38: #{tpu_custom_call.1} parent=35 // pred_check_branch
          %195 = sbr.rel (%p193) target = $region40
        $region39: #{tpu_custom_call.1} parent=35 // pred_region
          %197 = dma.done %s189, 1024
        $region40: #{tpu_custom_call.1} parent=35 // pred_fallthru
          _
        %s198 = sand.u32 %s29, 1
        %s199 = scalar_lea.sflag [#allocation3], %s198
        %s200 = sand.u32 %s29, 1
        %s201 = smul.addr %s200, 64
        %s202 = scalar_lea.vmem [#allocation2], %s201
        %p203 = pneg %p42
        %p204 = pneg %p39
        %p205 = pneg %p63
        %p206 = pneg %p60
        %p207 = pneg %p84
        %p208 = pneg %p81
        %p209 = pneg %p105
        %p210 = pneg %p102
        %p211 = pneg %p131
        %p212 = pneg %p128
        %s213 = sand.u32 %s118, 1
        %s214 = scalar_lea.sflag [#allocation4], %s213
        %s215 = sand.u32 %s118, 1
        %s216 = smul.addr %s215, 8
        %s217 = scalar_lea.vmem [#allocation5], %s216
        %s218 = smul.u32 8, %s21
        %v219 = vld [vmem:[%s192] sm:$0xff]
        %v220 = vld [vmem:[%s192 + $0x8] sm:$0xff]
        %v221 = vld [vmem:[%s192 + $0x10] sm:$0xff]
        %v222 = vld [vmem:[%s192 + $0x18] sm:$0xff]
        %v223 = vld [vmem:[%s192 + $0x20] sm:$0xff]
        %v224 = vld [vmem:[%s192 + $0x28] sm:$0xff]
        %v225 = vld [vmem:[%s192 + $0x30] sm:$0xff]
        %v226 = vld [vmem:[%s192 + $0x38] sm:$0xff]
        %v227 = vld [vmem:[%s1] sm:$0xff]
        %v228 = vld [vmem:[%s1 + $0x8] sm:$0xff]
        %v229 = vld [vmem:[%s1 + $0x10] sm:$0xff]
        %v230 = vld [vmem:[%s1 + $0x18] sm:$0xff]
        %v231 = vld [vmem:[%s1 + $0x20] sm:$0xff]
        %v232 = vld [vmem:[%s1 + $0x28] sm:$0xff]
        %v233 = vld [vmem:[%s2] sm:$0x1]
        %v235 = vperm.slane %v233, 0
        %vm237 = vcmask 392192
        %v239 = vsel %vm237, %v219, 0
        %v242 = vsel %vm237, %v220, 0
        %v245 = vsel %vm237, %v221, 0
        %v248 = vsel %vm237, %v222, 0
        %v251 = vsel %vm237, %v223, 0
        %v254 = vsel %vm237, %v224, 0
        %v257 = vsel %vm237, %v225, 0
        %v260 = vsel %vm237, %v226, 0
        %262 = vmatpush.msra.mxu0 0.0
        %263 = vmatpush.msra.mxu0 0.0
        %264 = vmatpush.msra.mxu0 0.0
        %265 = vmatpush.msra.mxu0 0.0
        %266 = vmatpush.msra.mxu0 0.0
        %267 = vmatpush.msra.mxu0 0.0
        %268 = vmatpush.msra.mxu0 0.0
        %269 = vmatpush.msra.mxu0 0.0
        %270 = vmatpush.msra.mxu0 0.0
        %271 = vmatpush.msra.mxu0 0.0
        %272 = vmatpush.msra.mxu0 %v232
        %273 = vmatpush.msra.mxu0 %v231
        %274 = vmatpush.msra.mxu0 %v230
        %275 = vmatpush.msra.mxu0 %v229
        %276 = vmatpush.msra.mxu0 %v228
        %277 = vmatpush.msra.mxu0 %v227
        %278 = vmatmul.f32.gmra.mxu0 %v239
        %v279 = vpop.f32.mrf.mxu0
        %v280 = vadd.f32 %v235, %v279
        %281 = vmatmul.f32.gmra.mxu0 %v242
        %v282 = vpop.f32.mrf.mxu0
        %v283 = vadd.f32 %v235, %v282
        %284 = vmatmul.f32.gmra.mxu0 %v245
        %v285 = vpop.f32.mrf.mxu0
        %v286 = vadd.f32 %v235, %v285
        %287 = vmatmul.f32.gmra.mxu0 %v248
        %v288 = vpop.f32.mrf.mxu0
        %v289 = vadd.f32 %v235, %v288
        %290 = vmatmul.f32.gmra.mxu0 %v251
        %v291 = vpop.f32.mrf.mxu0
        %v292 = vadd.f32 %v235, %v291
        %293 = vmatmul.f32.gmra.mxu0 %v254
        %v294 = vpop.f32.mrf.mxu0
        %v295 = vadd.f32 %v235, %v294
        %296 = vmatmul.f32.gmra.mxu0 %v257
        %v297 = vpop.f32.mrf.mxu0
        %v298 = vadd.f32 %v235, %v297
        %299 = vmatmul.f32.gmra.mxu0 %v260
        %v300 = vpop.f32.mrf.mxu0
        %v301 = vadd.f32 %v235, %v300
        %302 = vdwg.mxu0
        %v303 = vtanh.pop %v280
        %v304 = vtanh.pop %v283
        %v305 = vtanh.pop %v286
        %v306 = vtanh.pop %v289
        %v307 = vtanh.pop %v292
        %v308 = vtanh.pop %v295
        %v309 = vtanh.pop %v298
        %v310 = vtanh.pop %v301
        %v311 = vld [vmem:[%s3] sm:$0x1]
        %v313 = vperm.slane %v311, 0
        %v315 = vmul.f32 %v303, %v313
        %v316 = vmul.f32 %v304, %v313
        %v317 = vmul.f32 %v305, %v313
        %v318 = vmul.f32 %v306, %v313
        %v319 = vmul.f32 %v307, %v313
        %v320 = vmul.f32 %v308, %v313
        %v321 = vmul.f32 %v309, %v313
        %v322 = vmul.f32 %v310, %v313
        %vm323 = vcmask 261120
        %v324 = vsel %vm323, %v315, 0.0
        %325 = vadd.xlane.f32.xlu0 %v324
        %v326 = vpop.xlane.xlu0 %325
        %v327 = vsel %vm323, %v316, 0.0
        %328 = vadd.xlane.f32.xlu0 %v327
        %v329 = vpop.xlane.xlu0 %328
        %v330 = vsel %vm323, %v317, 0.0
        %331 = vadd.xlane.f32.xlu0 %v330
        %v332 = vpop.xlane.xlu0 %331
        %v333 = vsel %vm323, %v318, 0.0
        %334 = vadd.xlane.f32.xlu0 %v333
        %v335 = vpop.xlane.xlu0 %334
        %v336 = vsel %vm323, %v319, 0.0
        %337 = vadd.xlane.f32.xlu0 %v336
        %v338 = vpop.xlane.xlu0 %337
        %v339 = vsel %vm323, %v320, 0.0
        %340 = vadd.xlane.f32.xlu0 %v339
        %v341 = vpop.xlane.xlu0 %340
        %v342 = vsel %vm323, %v321, 0.0
        %343 = vadd.xlane.f32.xlu0 %v342
        %v344 = vpop.xlane.xlu0 %343
        %v345 = vsel %vm323, %v322, 0.0
        %346 = vadd.xlane.f32.xlu0 %v345
        %v347 = vpop.xlane.xlu0 %346
        %v348 = vrot.slane %v326, 4
        %v349 = vmax.f32 %v326, %v348
        %v350 = vrot.slane %v349, 2
        %v351 = vmax.f32 %v349, %v350
        %v352 = vrot.slane %v351, 1
        %v353 = vmax.f32 %v351, %v352
        %v354 = vrot.slane %v329, 4
        %v355 = vmax.f32 %v329, %v354
        %v356 = vrot.slane %v355, 2
        %v357 = vmax.f32 %v355, %v356
        %v358 = vrot.slane %v357, 1
        %v359 = vmax.f32 %v357, %v358
        %v360 = vrot.slane %v332, 4
        %v361 = vmax.f32 %v332, %v360
        %v362 = vrot.slane %v361, 2
        %v363 = vmax.f32 %v361, %v362
        %v364 = vrot.slane %v363, 1
        %v365 = vmax.f32 %v363, %v364
        %v366 = vrot.slane %v335, 4
        %v367 = vmax.f32 %v335, %v366
        %v368 = vrot.slane %v367, 2
        %v369 = vmax.f32 %v367, %v368
        %v370 = vrot.slane %v369, 1
        %v371 = vmax.f32 %v369, %v370
        %v372 = vrot.slane %v338, 4
        %v373 = vmax.f32 %v338, %v372
        %v374 = vrot.slane %v373, 2
        %v375 = vmax.f32 %v373, %v374
        %v376 = vrot.slane %v375, 1
        %v377 = vmax.f32 %v375, %v376
        %v378 = vrot.slane %v341, 4
        %v379 = vmax.f32 %v341, %v378
        %v380 = vrot.slane %v379, 2
        %v381 = vmax.f32 %v379, %v380
        %v382 = vrot.slane %v381, 1
        %v383 = vmax.f32 %v381, %v382
        %v384 = vrot.slane %v344, 4
        %v385 = vmax.f32 %v344, %v384
        %v386 = vrot.slane %v385, 2
        %v387 = vmax.f32 %v385, %v386
        %v388 = vrot.slane %v387, 1
        %v389 = vmax.f32 %v387, %v388
        %v390 = vrot.slane %v347, 4
        %v391 = vmax.f32 %v347, %v390
        %v392 = vrot.slane %v391, 2
        %v393 = vmax.f32 %v391, %v392
        %v394 = vrot.slane %v393, 1
        %v395 = vmax.f32 %v393, %v394
        %v396 = vsub.f32 %v326, %v353
        %v397 = vsub.f32 %v329, %v359
        %v398 = vsub.f32 %v332, %v365
        %v399 = vsub.f32 %v335, %v371
        %v400 = vsub.f32 %v338, %v377
        %v401 = vsub.f32 %v341, %v383
        %v402 = vsub.f32 %v344, %v389
        %v403 = vsub.f32 %v347, %v395
        %v404 = vmul.f32 %v396, 1.442695
        %v405 = vpow.pop %v404
        %v406 = vmul.f32 %v397, 1.442695
        %v407 = vpow.pop %v406
        %v408 = vmul.f32 %v398, 1.442695
        %v409 = vpow.pop %v408
        %v410 = vmul.f32 %v399, 1.442695
        %v411 = vpow.pop %v410
        %v412 = vmul.f32 %v400, 1.442695
        %v413 = vpow.pop %v412
        %v414 = vmul.f32 %v401, 1.442695
        %v415 = vpow.pop %v414
        %v416 = vmul.f32 %v402, 1.442695
        %v417 = vpow.pop %v416
        %v418 = vmul.f32 %v403, 1.442695
        %v419 = vpow.pop %v418
        %v420 = vrot.slane %v405, 4
        %v421 = vadd.f32 %v405, %v420
        %v422 = vrot.slane %v421, 2
        %v423 = vadd.f32 %v421, %v422
        %v424 = vrot.slane %v423, 1
        %v425 = vadd.f32 %v423, %v424
        %v426 = vrot.slane %v407, 4
        %v427 = vadd.f32 %v407, %v426
        %v428 = vrot.slane %v427, 2
        %v429 = vadd.f32 %v427, %v428
        %v430 = vrot.slane %v429, 1
        %v431 = vadd.f32 %v429, %v430
        %v432 = vrot.slane %v409, 4
        %v433 = vadd.f32 %v409, %v432
        %v434 = vrot.slane %v433, 2
        %v435 = vadd.f32 %v433, %v434
        %v436 = vrot.slane %v435, 1
        %v437 = vadd.f32 %v435, %v436
        %v438 = vrot.slane %v411, 4
        %v439 = vadd.f32 %v411, %v438
        %v440 = vrot.slane %v439, 2
        %v441 = vadd.f32 %v439, %v440
        %v442 = vrot.slane %v441, 1
        %v443 = vadd.f32 %v441, %v442
        %v444 = vrot.slane %v413, 4
        %v445 = vadd.f32 %v413, %v444
        %v446 = vrot.slane %v445, 2
        %v447 = vadd.f32 %v445, %v446
        %v448 = vrot.slane %v447, 1
        %v449 = vadd.f32 %v447, %v448
        %v450 = vrot.slane %v415, 4
        %v451 = vadd.f32 %v415, %v450
        %v452 = vrot.slane %v451, 2
        %v453 = vadd.f32 %v451, %v452
        %v454 = vrot.slane %v453, 1
        %v455 = vadd.f32 %v453, %v454
        %v456 = vrot.slane %v417, 4
        %v457 = vadd.f32 %v417, %v456
        %v458 = vrot.slane %v457, 2
        %v459 = vadd.f32 %v457, %v458
        %v460 = vrot.slane %v459, 1
        %v461 = vadd.f32 %v459, %v460
        %v462 = vrot.slane %v419, 4
        %v463 = vadd.f32 %v419, %v462
        %v464 = vrot.slane %v463, 2
        %v465 = vadd.f32 %v463, %v464
        %v466 = vrot.slane %v465, 1
        %v467 = vadd.f32 %v465, %v466
        %v468 = vrcp.pop %v425
        %v469 = vmul.f32 %v425, %v468
        %v470 = vsub.f32 1.0, %v469
        %v471 = vmul.f32 %v468, %v470
        %v472 = vadd.f32 %v468, %v471
        %vm473 = vweird.f32 %v425
        %vm474 = vweird.f32 %v468
        %vm475 = vmor %vm473, %vm474
        %v476 = vsel %vm475, %v468, %v472
        %v477 = vand.u32 2147483647, %v425
        %vm478 = vcmp.eq.f32.partialorder %v477, 8.507059e+37
        %v479 = vand.u32 %v425, 2147483648
        %v480 = vor.u32 1.1754944e-38, %v479
        %v481 = vsel %vm478, %v480, %v476
        %v482 = vrcp.pop %v431
        %v483 = vmul.f32 %v431, %v482
        %v484 = vsub.f32 1.0, %v483
        %v485 = vmul.f32 %v482, %v484
        %v486 = vadd.f32 %v482, %v485
        %vm487 = vweird.f32 %v431
        %vm488 = vweird.f32 %v482
        %vm489 = vmor %vm487, %vm488
        %v490 = vsel %vm489, %v482, %v486
        %v491 = vand.u32 2147483647, %v431
        %vm492 = vcmp.eq.f32.partialorder %v491, 8.507059e+37
        %v493 = vand.u32 %v431, 2147483648
        %v494 = vor.u32 1.1754944e-38, %v493
        %v495 = vsel %vm492, %v494, %v490
        %v496 = vrcp.pop %v437
        %v497 = vmul.f32 %v437, %v496
        %v498 = vsub.f32 1.0, %v497
        %v499 = vmul.f32 %v496, %v498
        %v500 = vadd.f32 %v496, %v499
        %vm501 = vweird.f32 %v437
        %vm502 = vweird.f32 %v496
        %vm503 = vmor %vm501, %vm502
        %v504 = vsel %vm503, %v496, %v500
        %v505 = vand.u32 2147483647, %v437
        %vm506 = vcmp.eq.f32.partialorder %v505, 8.507059e+37
        %v507 = vand.u32 %v437, 2147483648
        %v508 = vor.u32 1.1754944e-38, %v507
        %v509 = vsel %vm506, %v508, %v504
        %v510 = vrcp.pop %v443
        %v511 = vmul.f32 %v443, %v510
        %v512 = vsub.f32 1.0, %v511
        %v513 = vmul.f32 %v510, %v512
        %v514 = vadd.f32 %v510, %v513
        %vm515 = vweird.f32 %v443
        %vm516 = vweird.f32 %v510
        %vm517 = vmor %vm515, %vm516
        %v518 = vsel %vm517, %v510, %v514
        %v519 = vand.u32 2147483647, %v443
        %vm520 = vcmp.eq.f32.partialorder %v519, 8.507059e+37
        %v521 = vand.u32 %v443, 2147483648
        %v522 = vor.u32 1.1754944e-38, %v521
        %v523 = vsel %vm520, %v522, %v518
        %v524 = vrcp.pop %v449
        %v525 = vmul.f32 %v449, %v524
        %v526 = vsub.f32 1.0, %v525
        %v527 = vmul.f32 %v524, %v526
        %v528 = vadd.f32 %v524, %v527
        %vm529 = vweird.f32 %v449
        %vm530 = vweird.f32 %v524
        %vm531 = vmor %vm529, %vm530
        %v532 = vsel %vm531, %v524, %v528
        %v533 = vand.u32 2147483647, %v449
        %vm534 = vcmp.eq.f32.partialorder %v533, 8.507059e+37
        %v535 = vand.u32 %v449, 2147483648
        %v536 = vor.u32 1.1754944e-38, %v535
        %v537 = vsel %vm534, %v536, %v532
        %v538 = vrcp.pop %v455
        %v539 = vmul.f32 %v455, %v538
        %v540 = vsub.f32 1.0, %v539
        %v541 = vmul.f32 %v538, %v540
        %v542 = vadd.f32 %v538, %v541
        %vm543 = vweird.f32 %v455
        %vm544 = vweird.f32 %v538
        %vm545 = vmor %vm543, %vm544
        %v546 = vsel %vm545, %v538, %v542
        %v547 = vand.u32 2147483647, %v455
        %vm548 = vcmp.eq.f32.partialorder %v547, 8.507059e+37
        %v549 = vand.u32 %v455, 2147483648
        %v550 = vor.u32 1.1754944e-38, %v549
        %v551 = vsel %vm548, %v550, %v546
        %v552 = vrcp.pop %v461
        %v553 = vmul.f32 %v461, %v552
        %v554 = vsub.f32 1.0, %v553
        %v555 = vmul.f32 %v552, %v554
        %v556 = vadd.f32 %v552, %v555
        %vm557 = vweird.f32 %v461
        %vm558 = vweird.f32 %v552
        %vm559 = vmor %vm557, %vm558
        %v560 = vsel %vm559, %v552, %v556
        %v561 = vand.u32 2147483647, %v461
        %vm562 = vcmp.eq.f32.partialorder %v561, 8.507059e+37
        %v563 = vand.u32 %v461, 2147483648
        %v564 = vor.u32 1.1754944e-38, %v563
        %v565 = vsel %vm562, %v564, %v560
        %v566 = vrcp.pop %v467
        %v567 = vmul.f32 %v467, %v566
        %v568 = vsub.f32 1.0, %v567
        %v569 = vmul.f32 %v566, %v568
        %v570 = vadd.f32 %v566, %v569
        %vm571 = vweird.f32 %v467
        %vm572 = vweird.f32 %v566
        %vm573 = vmor %vm571, %vm572
        %v574 = vsel %vm573, %v566, %v570
        %v575 = vand.u32 2147483647, %v467
        %vm576 = vcmp.eq.f32.partialorder %v575, 8.507059e+37
        %v577 = vand.u32 %v467, 2147483648
        %v578 = vor.u32 1.1754944e-38, %v577
        %v579 = vsel %vm576, %v578, %v574
        %v580 = vmul.f32 %v405, %v481
        %v581 = vmul.f32 %v407, %v495
        %v582 = vmul.f32 %v409, %v509
        %v583 = vmul.f32 %v411, %v523
        %v584 = vmul.f32 %v413, %v537
        %v585 = vmul.f32 %v415, %v551
        %v586 = vmul.f32 %v417, %v565
        %v587 = vmul.f32 %v419, %v579
        %v588 = vmul.f32 %v219, %v580
        %v589 = vmul.f32 %v220, %v581
        %v590 = vmul.f32 %v221, %v582
        %v591 = vmul.f32 %v222, %v583
        %v592 = vmul.f32 %v223, %v584
        %v593 = vmul.f32 %v224, %v585
        %v594 = vmul.f32 %v225, %v586
        %v595 = vmul.f32 %v226, %v587
        %vm596 = vcmask 392448
        %v597 = vsel %vm596, %v588, 0.0
        %v598 = vrot.slane %v597, 4
        %v599 = vadd.f32 %v597, %v598
        %v600 = vrot.slane %v599, 2
        %v601 = vadd.f32 %v599, %v600
        %v602 = vrot.slane %v601, 1
        %v603 = vadd.f32 %v601, %v602
        %v604 = vsel %vm596, %v589, 0.0
        %v605 = vrot.slane %v604, 4
        %v606 = vadd.f32 %v604, %v605
        %v607 = vrot.slane %v606, 2
        %v608 = vadd.f32 %v606, %v607
        %v609 = vrot.slane %v608, 1
        %v610 = vadd.f32 %v608, %v609
        %v611 = vsel %vm596, %v590, 0.0
        %v612 = vrot.slane %v611, 4
        %v613 = vadd.f32 %v611, %v612
        %v614 = vrot.slane %v613, 2
        %v615 = vadd.f32 %v613, %v614
        %v616 = vrot.slane %v615, 1
        %v617 = vadd.f32 %v615, %v616
        %v618 = vsel %vm596, %v591, 0.0
        %v619 = vrot.slane %v618, 4
        %v620 = vadd.f32 %v618, %v619
        %v621 = vrot.slane %v620, 2
        %v622 = vadd.f32 %v620, %v621
        %v623 = vrot.slane %v622, 1
        %v624 = vadd.f32 %v622, %v623
        %v625 = vsel %vm596, %v592, 0.0
        %v626 = vrot.slane %v625, 4
        %v627 = vadd.f32 %v625, %v626
        %v628 = vrot.slane %v627, 2
        %v629 = vadd.f32 %v627, %v628
        %v630 = vrot.slane %v629, 1
        %v631 = vadd.f32 %v629, %v630
        %v632 = vsel %vm596, %v593, 0.0
        %v633 = vrot.slane %v632, 4
        %v634 = vadd.f32 %v632, %v633
        %v635 = vrot.slane %v634, 2
        %v636 = vadd.f32 %v634, %v635
        %v637 = vrot.slane %v636, 1
        %v638 = vadd.f32 %v636, %v637
        %v639 = vsel %vm596, %v594, 0.0
        %v640 = vrot.slane %v639, 4
        %v641 = vadd.f32 %v639, %v640
        %v642 = vrot.slane %v641, 2
        %v643 = vadd.f32 %v641, %v642
        %v644 = vrot.slane %v643, 1
        %v645 = vadd.f32 %v643, %v644
        %v646 = vsel %vm596, %v595, 0.0
        %v647 = vrot.slane %v646, 4
        %v648 = vadd.f32 %v646, %v647
        %v649 = vrot.slane %v648, 2
        %v650 = vadd.f32 %v648, %v649
        %v651 = vrot.slane %v650, 1
        %v652 = vadd.f32 %v650, %v651
        %vm661 = vcmask 1041409
        %v662 = vsel %vm661, %v610, %v603
        %vm663 = vcmask 1042434
        %v664 = vsel %vm663, %v617, %v662
        %vm665 = vcmask 1043459
        %v666 = vsel %vm665, %v624, %v664
        %vm667 = vcmask 1044484
        %v668 = vsel %vm667, %v631, %v666
        %vm669 = vcmask 1045509
        %v670 = vsel %vm669, %v638, %v668
        %vm671 = vcmask 1046534
        %v672 = vsel %vm671, %v645, %v670
        %vm673 = vcmask 1047559
        %v674 = vsel %vm673, %v652, %v672
        %675 = vrot.lane.b32.xlu0 %v674, 96
        %v676 = vpop.permute.xlu0 %675
        %vm678 = vcmask 130048
        %679 = vst.msk [vmem:[%s217] sm:$0xff] %vm678, %v676
        %s680 = sand.u32 %s118, 1
        %s681 = scalar_lea.sflag [#allocation4], %s680
        %s682 = sand.u32 %s118, 1
        %s683 = smul.addr %s682, 8
        %s684 = scalar_lea.vmem [#allocation5], %s683
        // Predicated region
        $region41: #{tpu_custom_call.1} parent=35 // pred_check
          %p685 = pneg %p128
        $region42: #{tpu_custom_call.1} parent=35 // pred_check_branch
          %687 = sbr.rel (%p685) target = $region44
        $region43: #{tpu_custom_call.1} parent=35 // pred_region
          %689 = vsyncadd %s681, 0
          %s690 = smul.addr %s21, 8
          %s691 = scalar_lea.hbm %s4, %s690
          %s693 = sshll.u32 %s684, 4
          %s694 = int_to_ptr.vmem [resolvable:$true] %s693
          %s695 = sshll.u32 %s691, 4
          %s696 = int_to_ptr.hbm [resolvable:$true] %s695
          %698 = dma.vmem_to_hbm [thread:$0]  %s694, 128, %s696, %s681
        $region44: #{tpu_custom_call.1} parent=35 // pred_fallthru
          _
      $region36: #{tpu_custom_call.1} parent=5 // pred_fallthru
        _
      %p699 = scmp.le.s32.totalorder 2, %s16
      // Predicated region
      $region45: #{tpu_custom_call.1} parent=5 // pred_check
        %p700 = pneg %p699
      $region46: #{tpu_custom_call.1} parent=5 // pred_check_branch
        %702 = sbr.rel (%p700) target = $region48
      $region47: #{tpu_custom_call.1} parent=5 // pred_region
        %s703 = ssub.s32 %s16, 2
        // Predicated region
        $region49: #{tpu_custom_call.1} parent=47 // pred_check
          %p704 = pneg %p134
        $region50: #{tpu_custom_call.1} parent=47 // pred_check_branch
          %706 = sbr.rel (%p704) target = $region52
        $region51: #{tpu_custom_call.1} parent=47 // pred_region
          %s707 = sand.u32 %s119, 1
          %s708 = scalar_lea.sflag [#allocation4], %s707
          %s709 = sand.u32 %s119, 1
          %s710 = smul.addr %s709, 8
          %s711 = scalar_lea.vmem [#allocation5], %s710
          %713 = dma.done %s708, 128
        $region52: #{tpu_custom_call.1} parent=47 // pred_fallthru
          _
      $region48: #{tpu_custom_call.1} parent=5 // pred_fallthru
        _
    $region6: #{tpu_custom_call.1} parent=1 // loop_footer
      %s20 = sadd.s32 1, %s16
    $region7: #{tpu_custom_call.1} parent=1 // loop_footer_branch
      %15 = sbr.rel target = $region3
    $region8: #{tpu_custom_call.1} parent=1 // loop_exit
      _
    %714 = vsyncpa [#allocation3], 1
    %s715 = scalar_lea.sflag [#allocation3], 1
    %716 = vsyncpa %s715, 1
    %717 = vsyncpa [#allocation4], 1
    %s718 = scalar_lea.sflag [#allocation4], 1
    %719 = vsyncpa %s718, 1

</llo_original>
